<compile_context>
chip_gen: v7x
topology: tpu7x:2x2x1
jax: 0.10.0
libtpu: 0.0.40
codegen_flags: <defaults>
</compile_context>

<pallas_src>
import functools

import jax
import jax.numpy as jnp
from jax import lax
from jax.experimental import pallas as pl
from jax.experimental.pallas import tpu as pltpu


def _conv_in_relu_kernel(xcol_ref, w_ref, o_ref, *, eps):
    """One batch element per grid step.

    xcol_ref: (1, Cin*KH*KW, Hout*Wout)  im2col'd input (lane-dense)
    w_ref   : (Cout, Cin*KH*KW)          reshaped conv weight
    o_ref   : (1, Cout, Hout*Wout)       lane-dense output
    """
    xcol = xcol_ref[0]                                            # (K, HW)
    # Whole conv = one MXU matmul with f32 accumulation.
    acc = jnp.dot(w_ref[...], xcol, preferred_element_type=jnp.float32)
    # NOTE: conv bias omitted - it cancels exactly under InstanceNorm(affine=False).
    # InstanceNorm2d: per-channel mean / biased variance over the spatial dim.
    mean = jnp.mean(acc, axis=1, keepdims=True)                   # (Cout, 1)
    cen = acc - mean
    var = jnp.mean(cen * cen, axis=1, keepdims=True)              # (Cout, 1)
    y = cen * lax.rsqrt(var + eps)                                # EUP rsqrt
    # ReLU
    o_ref[0] = jnp.maximum(y, 0.0).astype(o_ref.dtype)


def conv_block_forward(x, w, b, *, eps=1e-5):
    """x: (N, Cin, H, W); w: (Cout, Cin, KH, KW); b: (Cout,) (cancels in the norm)."""
    del b  # bias is a per-channel constant -> exact no-op under InstanceNorm2d
    N, Cin, H, W = x.shape
    Cout, _, KH, KW = w.shape
    ph, pw = (KH - 1) // 2, (KW - 1) // 2
    Hout = H + 2 * ph - KH + 1
    Wout = W + 2 * pw - KW + 1
    K = Cin * KH * KW
    HW = Hout * Wout

    # im2col in the XLA wrapper (pads/slices fuse in XLA); the kernel then sees
    # the ideal lane-dense layout and needs no in-kernel relayout copies.
    xp = jnp.pad(x, ((0, 0), (0, 0), (ph, ph), (pw, pw)))
    cols = [xp[:, :, kh:kh + Hout, kw:kw + Wout]
            for kh in range(KH) for kw in range(KW)]
    xcol = jnp.stack(cols, axis=2).reshape(N, K, HW)              # (N, K, HW)

    w2 = w.reshape(Cout, K)                                       # (Cout, K)

    kernel = functools.partial(_conv_in_relu_kernel, eps=eps)
    out = pl.pallas_call(
        kernel,
        out_shape=jax.ShapeDtypeStruct((N, Cout, HW), x.dtype),
        grid=(N,),
        in_specs=[
            pl.BlockSpec((1, K, HW), lambda n: (n, 0, 0)),
            pl.BlockSpec((Cout, K), lambda n: (0, 0)),
        ],
        out_specs=pl.BlockSpec((1, Cout, HW), lambda n: (n, 0, 0)),
        compiler_params=pltpu.CompilerParams(
            dimension_semantics=("parallel",)),
    )(xcol, w2)
    return out.reshape(N, Cout, Hout, Wout)


def _ref_forward(x, w, b, *, eps=1e-5):
    """Pure-XLA reference: Conv2d (with bias) + InstanceNorm2d(affine=False) + ReLU."""
    KH, KW = w.shape[2], w.shape[3]
    ph, pw = (KH - 1) // 2, (KW - 1) // 2
    y = lax.conv_general_dilated(
        x, w, (1, 1), ((ph, ph), (pw, pw)),
        dimension_numbers=("NCHW", "OIHW", "NCHW"),
    ) + b[None, :, None, None]
    mean = y.mean(axis=(2, 3), keepdims=True)
    var = ((y - mean) ** 2).mean(axis=(2, 3), keepdims=True)
    y = (y - mean) * lax.rsqrt(var + eps)
    return jnp.maximum(y, 0.0)


if __name__ == "__main__":
    # module config: Conv_block(in_ch=4, out_ch=4, size=(3, 3))
    in_ch, out_ch, size = 4, 4, (3, 3)
    N, H, W = 2, 16, 16

    key = jax.random.PRNGKey(0)
    kx, kw, kb = jax.random.split(key, 3)
    x = jax.random.normal(kx, (N, in_ch, H, W), jnp.float32)
    w = 0.1 * jax.random.normal(kw, (out_ch, in_ch, size[0], size[1]), jnp.float32)
    b = 0.1 * jax.random.normal(kb, (out_ch,), jnp.float32)

    out = jax.block_until_ready(conv_block_forward(x, w, b))
    assert out.shape == (N, out_ch, H, W), out.shape

    ref = jax.block_until_ready(_ref_forward(x, w, b))
    assert jnp.allclose(out, ref, atol=1e-4, rtol=1e-4), "mismatch vs XLA reference"

    print("KERNEL_OK")
</pallas_src>

<mosaic_0001>
module attributes {stable_mosaic.version = 11 : i64} {
  func.func @_conv_in_relu_kernel(%arg0: i32, %arg1: memref<1x36x256xf32, #tpu.memory_space<vmem>>, %arg2: memref<4x36xf32, #tpu.memory_space<vmem>>, %arg3: memref<1x4x256xf32, #tpu.memory_space<vmem>>) attributes {dimension_semantics = [#tpu.dimension_semantics<parallel>], iteration_bounds = array<i64: 2>, scalar_prefetch = 0 : i64, scratch_operands = 0 : i64, tpu.core_type = #tpu.core_type<tc>, window_params = [{transform_indices = @transform_0, window_bounds = array<i64: 1, 36, 256>}, {pipeline_mode = #tpu.pipeline_mode<synchronous>, transform_indices = @transform_1, window_bounds = array<i64: 4, 36>}, {transform_indices = @transform_2, window_bounds = array<i64: 1, 4, 256>}]} {
    %c0 = arith.constant 0 : index
    %c0_0 = arith.constant 0 : index
    %c0_1 = arith.constant 0 : index
    %0 = vector.load %arg1[%c0, %c0_0, %c0_1] : memref<1x36x256xf32, #tpu.memory_space<vmem>>, vector<1x36x256xf32>
    %1 = vector.shape_cast %0 : vector<1x36x256xf32> to vector<36x256xf32>
    %c0_2 = arith.constant 0 : index
    %c0_3 = arith.constant 0 : index
    %2 = vector.load %arg2[%c0_2, %c0_3] : memref<4x36xf32, #tpu.memory_space<vmem>>, vector<4x36xf32>
    %cst = arith.constant dense<0.000000e+00> : vector<4x256xf32>
    %3 = tpu.matmul %2, %1, %cst {dimension_numbers = #tpu.dot_dimension_numbers<[1], [0], [0], [1], [0, 0, 1, 1], [], []>} : vector<4x36xf32>, vector<36x256xf32>, vector<4x256xf32> -> vector<4x256xf32>
    %cst_4 = arith.constant dense<0.000000e+00> : vector<4xf32>
    %4 = vector.multi_reduction <add>, %3, %cst_4 [1] : vector<4x256xf32> to vector<4xf32>
    %5 = vector.shape_cast %4 : vector<4xf32> to vector<4x1xf32>
    %cst_5 = arith.constant 2.560000e+02 : f32
    %6 = vector.broadcast %cst_5 : f32 to vector<4x1xf32>
    %7 = arith.divf %5, %6 : vector<4x1xf32>
    %8 = vector.broadcast %7 : vector<4x1xf32> to vector<4x256xf32>
    %9 = arith.subf %3, %8 : vector<4x256xf32>
    %10 = arith.mulf %9, %9 : vector<4x256xf32>
    %cst_6 = arith.constant dense<0.000000e+00> : vector<4xf32>
    %11 = vector.multi_reduction <add>, %10, %cst_6 [1] : vector<4x256xf32> to vector<4xf32>
    %12 = vector.shape_cast %11 : vector<4xf32> to vector<4x1xf32>
    %cst_7 = arith.constant 2.560000e+02 : f32
    %13 = vector.broadcast %cst_7 : f32 to vector<4x1xf32>
    %14 = arith.divf %12, %13 : vector<4x1xf32>
    %cst_8 = arith.constant 9.99999974E-6 : f32
    %15 = vector.broadcast %cst_8 : f32 to vector<4x1xf32>
    %16 = arith.addf %14, %15 : vector<4x1xf32>
    %17 = math.rsqrt %16 : vector<4x1xf32>
    %18 = vector.broadcast %17 : vector<4x1xf32> to vector<4x256xf32>
    %19 = arith.mulf %9, %18 : vector<4x256xf32>
    %cst_9 = arith.constant 0.000000e+00 : f32
    %20 = vector.broadcast %cst_9 : f32 to vector<4x256xf32>
    %21 = arith.maximumf %19, %20 : vector<4x256xf32>
    %c0_10 = arith.constant 0 : index
    %c0_11 = arith.constant 0 : index
    %c0_12 = arith.constant 0 : index
    %22 = vector.load %arg3[%c0_10, %c0_11, %c0_12] : memref<1x4x256xf32, #tpu.memory_space<vmem>>, vector<1x4x256xf32>
    %23 = vector.shape_cast %22 : vector<1x4x256xf32> to vector<4x256xf32>
    %24 = vector.shape_cast %21 : vector<4x256xf32> to vector<1x4x256xf32>
    tpu.vector_store %arg3[%c0_10, %c0_11, %c0_12], %24 {strides = array<i32>} : memref<1x4x256xf32, #tpu.memory_space<vmem>>, vector<1x4x256xf32>,
    return
  }
  func.func @transform_0(%arg0: i32) -> (i32, i32, i32) {
    %c0_i32 = arith.constant 0 : i32
    %c0_i32_0 = arith.constant 0 : i32
    %c0_i32_1 = arith.constant 0 : i32
    return %arg0, %c0_i32, %c0_i32_0 : i32, i32, i32
  }
  func.func @transform_1(%arg0: i32) -> (i32, i32) {
    %c0_i32 = arith.constant 0 : i32
    %c0_i32_0 = arith.constant 0 : i32
    %c0_i32_1 = arith.constant 0 : i32
    return %c0_i32, %c0_i32_0 : i32, i32
  }
  func.func @transform_2(%arg0: i32) -> (i32, i32, i32) {
    %c0_i32 = arith.constant 0 : i32
    %c0_i32_0 = arith.constant 0 : i32
    %c0_i32_1 = arith.constant 0 : i32
    return %arg0, %c0_i32, %c0_i32_0 : i32, i32, i32
  }
}

</mosaic_0001>

<llo_original>
// kernel: tpu_custom_call.1
$region0: #{tpu_custom_call.1}
  #allocation0 [shape = 'u32[]', space=smem, size = 0x4, offset = 0x4, fixed_abs, tag = 'smem constant byte address 0x4 - core index']
  #allocation1 [shape = 'u32[144,128]{1,0:T(1,128)}', space=vmem, size = 0x12000, scoped, tag = 'internal scratch']
  %s0 = inlined_call_operand.vmem [shape: f32[2,36,256], index: 0, kind: input, shape index: {}]
  %s1 = inlined_call_operand.vmem [shape: f32[4,36], index: 1, kind: input, shape index: {}]
  %s2 = inlined_call_operand.hbm [shape: f32[2,4,256], index: 2, kind: output, shape index: {}]
  %s3 = sld [smem:[#allocation0]]
  $region41: #{tpu_custom_call.1} parent=0
    _
  %s5 = ssub.s32 1, %s3
  %s6 = scalar_select 0, %s5, %s3
  $region1: #{tpu_custom_call.1} parent=0
    #allocation2 [shape = 'u8[8192]{0}', space=vmem, size = 0x2000, scoped, tag = 'output window, operand 0']
    #allocation3 [shape = 's32[2]{0}', space=sflag, size = 0x8, scoped, tag = 'scoped memory for tpu_custom_call.1']
    %7 = vsyncpa [#allocation3], 0
    %s8 = scalar_lea.sflag [#allocation3], 1
    %9 = vsyncpa %s8, 0
    loop: start=0, step=1, limit=4
    $region2: #{tpu_custom_call.1} parent=1 // loop_pre_header
      _
    $region3: #{tpu_custom_call.1} parent=1 // loop_header
      %s11 = sphi 0, %s15
      %p12 = scmp.ge.s32.totalorder %s11, 4
      %s21 = sphi 0, %s23
      %s24 = sphi 0, %s21
      %s25 = sphi 0, %s24
      %s41 = sphi 0, %s25
      %s45 = sphi 0, %s45
      %s47 = sphi 0, %s45
      %s48 = sphi 0, %s47
      %s62 = sphi 0, %s48
      %s68 = sphi 0, %s70
      %s71 = sphi 0, %s68
      %s72 = sphi 0, %s71
      %s88 = sphi 0, %s72
    $region4: #{tpu_custom_call.1} parent=1 // loop_header_branch
      %14 = sbr.rel (%p12) target = $region8
    $region5: #{tpu_custom_call.1} parent=1 // loop_body
      %s16 = ssub.s32 %s11, 1
      %s17 = ssub.s32 %s11, 2
      %s18 = sadd.s32 %s11, 1
      %s19 = ssub.s32 %s11, %s18
      %p20 = scmp.eq.s32.totalorder %s19, 0
      %s22 = sadd.s32 %s21, 1
      %s23 = scalar_select %p20, %s21, %s22
      %p26 = pneg %p20
      %p27 = scmp.eq.s32.totalorder %s11, 1
      %p28 = por %p26, %p27
      %p29 = scmp.ne.s32.totalorder %s21, %s24
      %p30 = scmp.eq.s32.totalorder %s11, 0
      %p31 = por %p29, %p30
      %p32 = scmp.ne.s32.totalorder %s21, %s24
      %p33 = scmp.eq.s32.totalorder %s16, 1
      %p34 = por %p32, %p33
      %p35 = scmp.ne.s32.totalorder %s24, %s25
      %p36 = scmp.eq.s32.totalorder %s16, 0
      %p37 = por %p35, %p36
      %p38 = scmp.ne.s32.totalorder %s24, %s25
      %p39 = scmp.eq.s32.totalorder %s17, 1
      %p40 = por %p38, %p39
      %p42 = scmp.ne.s32.totalorder %s25, %s41
      %p43 = scmp.eq.s32.totalorder %s17, 0
      %p44 = por %p42, %p43
      %s46 = sadd.s32 %s45, 1
      %p49 = scmp.eq.s32.totalorder %s11, 1
      %p50 = scmp.ne.s32.totalorder %s45, %s47
      %p51 = scmp.eq.s32.totalorder %s11, 0
      %p52 = por %p50, %p51
      %p53 = scmp.ne.s32.totalorder %s45, %s47
      %p54 = scmp.eq.s32.totalorder %s16, 1
      %p55 = por %p53, %p54
      %p56 = scmp.ne.s32.totalorder %s47, %s48
      %p57 = scmp.eq.s32.totalorder %s16, 0
      %p58 = por %p56, %p57
      %p59 = scmp.ne.s32.totalorder %s47, %s48
      %p60 = scmp.eq.s32.totalorder %s17, 1
      %p61 = por %p59, %p60
      %p63 = scmp.ne.s32.totalorder %s48, %s62
      %p64 = scmp.eq.s32.totalorder %s17, 0
      %p65 = por %p63, %p64
      %s66 = ssub.s32 %s11, %s18
      %p67 = scmp.eq.s32.totalorder %s66, 0
      %s69 = sadd.s32 %s68, 1
      %s70 = scalar_select %p67, %s68, %s69
      %p73 = pneg %p67
      %p74 = scmp.eq.s32.totalorder %s11, 1
      %p75 = por %p73, %p74
      %p76 = scmp.ne.s32.totalorder %s68, %s71
      %p77 = scmp.eq.s32.totalorder %s11, 0
      %p78 = por %p76, %p77
      %p79 = scmp.ne.s32.totalorder %s68, %s71
      %p80 = scmp.eq.s32.totalorder %s16, 1
      %p81 = por %p79, %p80
      %p82 = scmp.ne.s32.totalorder %s71, %s72
      %p83 = scmp.eq.s32.totalorder %s16, 0
      %p84 = por %p82, %p83
      %p85 = scmp.ne.s32.totalorder %s71, %s72
      %p86 = scmp.eq.s32.totalorder %s17, 1
      %p87 = por %p85, %p86
      %p89 = scmp.ne.s32.totalorder %s72, %s88
      %p90 = scmp.eq.s32.totalorder %s17, 0
      %p91 = por %p89, %p90
      %p92 = scmp.le.s32.totalorder 1, %s11
      %p93 = scmp.lt.s32.totalorder %s11, 3
      %p94 = pnand %p92, %p93
      %p95 = pneg %p94
      // Predicated region
      $region9: #{tpu_custom_call.1} parent=5 // pred_check
        _
      $region10: #{tpu_custom_call.1} parent=5 // pred_check_branch
        %97 = sbr.rel (%p94) target = $region12
      $region11: #{tpu_custom_call.1} parent=5 // pred_region
        %s98 = ssub.s32 %s11, 1
        // Predicated region
        $region13: #{tpu_custom_call.1} parent=11 // pred_check
          %p99 = pneg %p58
        $region14: #{tpu_custom_call.1} parent=11 // pred_check_branch
          %101 = sbr.rel (%p99) target = $region16
        $region15: #{tpu_custom_call.1} parent=11 // pred_region
          _
        $region16: #{tpu_custom_call.1} parent=11 // pred_fallthru
          _
      $region12: #{tpu_custom_call.1} parent=5 // pred_fallthru
        _
      %p102 = scmp.lt.s32.totalorder %s11, 2
      // Predicated region
      $region17: #{tpu_custom_call.1} parent=5 // pred_check
        %p103 = pneg %p102
      $region18: #{tpu_custom_call.1} parent=5 // pred_check_branch
        %105 = sbr.rel (%p103) target = $region20
      $region19: #{tpu_custom_call.1} parent=5 // pred_region
        // Predicated region
        $region21: #{tpu_custom_call.1} parent=19 // pred_check
          %p106 = pneg %p31
        $region22: #{tpu_custom_call.1} parent=19 // pred_check_branch
          %108 = sbr.rel (%p106) target = $region24
        $region23: #{tpu_custom_call.1} parent=19 // pred_region
          %p109 = scmp.lt.s32.totalorder %s11, 1
          %s110 = scalar_select %p109, %s11, 1
          %s111 = smul.addr %s110, 10
          %s112 = smul.addr %s111, 8
          %s113 = scalar_lea.vmem %s0, %s112
        $region24: #{tpu_custom_call.1} parent=19 // pred_fallthru
          _
      $region20: #{tpu_custom_call.1} parent=5 // pred_fallthru
        _
      %p114 = scmp.le.s32.totalorder 1, %s11
      %p115 = scmp.lt.s32.totalorder %s11, 3
      %p116 = pnand %p114, %p115
      %p117 = pneg %p116
      // Predicated region
      $region25: #{tpu_custom_call.1} parent=5 // pred_check
        _
      $region26: #{tpu_custom_call.1} parent=5 // pred_check_branch
        %119 = sbr.rel (%p116) target = $region28
      $region27: #{tpu_custom_call.1} parent=5 // pred_region
        %s120 = ssub.s32 %s11, 1
        %p121 = scmp.lt.s32.totalorder %s16, 1
        %s122 = scalar_select %p121, %s16, 1
        %s123 = smul.addr %s122, 10
        %s124 = smul.addr %s123, 8
        %s125 = scalar_lea.vmem %s0, %s124
        %p126 = pneg %p37
        %p127 = pneg %p34
        %p128 = pneg %p58
        %p129 = pneg %p55
        %p130 = pneg %p84
        %p131 = pneg %p81
        %s132 = sand.u32 %s71, 1
        %s133 = scalar_lea.sflag [#allocation3], %s132
        %s134 = sand.u32 %s71, 1
        %s135 = smul.addr %s134, 8
        %s136 = scalar_lea.vmem [#allocation2], %s135
        %p137 = scmp.lt.s32.totalorder %s16, 1
        %s138 = scalar_select %p137, %s16, 1
        %s139 = smul.addr %s138, 10
        %s140 = smul.addr %s139, 8
        %s141 = scalar_lea.vmem %s0, %s140
        %v142 = vld [vmem:[%s141] sm:$0xff]
        %v143 = vld [vmem:[%s141 + $0x8] sm:$0xff]
        %v144 = vld [vmem:[%s141 + $0x10] sm:$0xff]
        %v145 = vld [vmem:[%s141 + $0x18] sm:$0xff]
        %v146 = vld [vmem:[%s141 + $0x20] sm:$0xff]
        %v147 = vld [vmem:[%s141 + $0x28] sm:$0xff]
        %v148 = vld [vmem:[%s141 + $0x30] sm:$0xff]
        %v149 = vld [vmem:[%s141 + $0x38] sm:$0xff]
        %v150 = vld [vmem:[%s141 + $0x40] sm:$0xf]
        %v151 = vld [vmem:[%s141 + $0x48] sm:$0xf]
        %v152 = vld [vmem:[%s1] sm:$0xf]
        %vm153 = vcmask 293888
        %v155 = vsel %vm153, %v152, 0
        %vm157 = vcmask 1043456
        %v159 = vsel %vm157, %v150, 0
        %v162 = vsel %vm157, %v151, 0
        %164 = vmatprep.subr.mxu0 %v143
        %165 = vmatpush1.msra.mxu0 %v142
        %166 = vmatprep.subr.mxu0 %v145
        %167 = vmatpush1.msra.mxu0 %v144
        %168 = vmatprep.subr.mxu0 %v147
        %169 = vmatpush1.msra.mxu0 %v146
        %170 = vmatprep.subr.mxu0 %v149
        %171 = vmatpush1.msra.mxu0 %v148
        %172 = vmatprep.subr.mxu0 %v162
        %173 = vmatpush1.msra.mxu0 %v159
        %174 = vmatprep.subr.mxu0 0.0
        %175 = vmatpush1.msra.mxu0 0.0
        %176 = vmatprep.subr.mxu0 0.0
        %177 = vmatpush1.msra.mxu0 0.0
        %178 = vmatprep.subr.mxu0 0.0
        %179 = vmatpush1.msra.mxu0 0.0
        %180 = vmatprep.subr.mxu0 0.0
        %181 = vmatpush1.msra.mxu0 0.0
        %182 = vmatprep.subr.mxu0 0.0
        %183 = vmatpush1.msra.mxu0 0.0
        %184 = vmatprep.subr.mxu0 0.0
        %185 = vmatpush1.msra.mxu0 0.0
        %186 = vmatprep.subr.mxu0 0.0
        %187 = vmatpush1.msra.mxu0 0.0
        %188 = vmatprep.subr.mxu0 0.0
        %189 = vmatpush1.msra.mxu0 0.0
        %190 = vmatprep.subr.mxu0 0.0
        %191 = vmatpush1.msra.mxu0 0.0
        %192 = vmatprep.subr.mxu0 0.0
        %193 = vmatpush1.msra.mxu0 0.0
        %194 = vmatprep.subr.mxu0 0.0
        %195 = vmatpush1.msra.mxu0 0.0
        %196 = vmatprep.subr.mxu0 0.0
        %197 = vmatpush1.msra.mxu0 0.0
        %198 = vmatprep.subr.mxu0 0.0
        %199 = vmatpush1.msra.mxu0 0.0
        %200 = vmatprep.subr.mxu0 0.0
        %201 = vmatpush1.msra.mxu0 0.0
        %202 = vmatprep.subr.mxu0 0.0
        %203 = vmatpush1.msra.mxu0 0.0
        %204 = vmatprep.subr.mxu0 0.0
        %205 = vmatpush1.msra.mxu0 0.0
        %206 = vmatprep.subr.mxu0 0.0
        %207 = vmatpush1.msra.mxu0 0.0
        %208 = vmatprep.subr.mxu0 0.0
        %209 = vmatpush1.msra.mxu0 0.0
        %210 = vmatprep.subr.mxu0 0.0
        %211 = vmatpush1.msra.mxu0 0.0
        %212 = vmatprep.subr.mxu0 0.0
        %213 = vmatpush1.msra.mxu0 0.0
        %214 = vmatprep.subr.mxu0 0.0
        %215 = vmatpush1.msra.mxu0 0.0
        %216 = vmatprep.subr.mxu0 0.0
        %217 = vmatpush1.msra.mxu0 0.0
        %218 = vmatprep.subr.mxu0 0.0
        %219 = vmatpush1.msra.mxu0 0.0
        %220 = vmatprep.subr.mxu0 0.0
        %221 = vmatpush1.msra.mxu0 0.0
        %222 = vmatprep.subr.mxu0 0.0
        %223 = vmatpush1.msra.mxu0 0.0
        %224 = vmatprep.subr.mxu0 0.0
        %225 = vmatpush1.msra.mxu0 0.0
        %226 = vmatprep.subr.mxu0 0.0
        %227 = vmatpush1.msra.mxu0 0.0
        %228 = vmatprep.mubr.f32.mxu0 0.0
        %229 = vmatmul.mubr.f32.gmra.mrb[0].mxu0 %v155
        %v230 = vpop.f32.mrb[0].mxu0
        %v231 = vadd.f32 0.0, %v230
        %v232 = vpop.f32.mrb[0].mxu0
        %v233 = vadd.f32 0.0, %v232
        %234 = vdwg.mxu0
        %v235 = vsel %vm157, %v231, 0.0
        %v236 = vsel %vm157, %v233, 0.0
        %v237 = vadd.f32 %v235, %v236
        %238 = vadd.xlane.f32.xlu0 %v237
        %v239 = vpop.xlane.xlu0 %238
        %v240 = vrcp.pop 256.0
        %v241 = vmul.f32 %v239, %v240
        %v242 = vsub.f32 %v231, %v241
        %v243 = vsub.f32 %v233, %v241
        %v244 = vmul.f32 %v242, %v242
        %v245 = vmul.f32 %v243, %v243
        %v246 = vsel %vm157, %v244, 0.0
        %v247 = vsel %vm157, %v245, 0.0
        %v248 = vadd.f32 %v246, %v247
        %249 = vadd.xlane.f32.xlu0 %v248
        %v250 = vpop.xlane.xlu0 %249
        %v251 = vmul.f32 %v250, %v240
        %v252 = vadd.f32 %v251, 1e-05
        %v253 = vrsqrt.pop %v252
        %v254 = vmul.f32 %v242, %v253
        %v255 = vmul.f32 %v243, %v253
        %v256 = vmax.f32 %v254, 0.0
        %v257 = vmax.f32 %v255, 0.0
        %v260 = vcombine.low %v256, %v257
        %262 = vst [vmem:[%s136] sm:$0xff] %v260
        %s263 = sand.u32 %s71, 1
        %s264 = scalar_lea.sflag [#allocation3], %s263
        %s265 = sand.u32 %s71, 1
        %s266 = smul.addr %s265, 8
        %s267 = scalar_lea.vmem [#allocation2], %s266
        // Predicated region
        $region29: #{tpu_custom_call.1} parent=27 // pred_check
          %p268 = pneg %p81
        $region30: #{tpu_custom_call.1} parent=27 // pred_check_branch
          %270 = sbr.rel (%p268) target = $region32
        $region31: #{tpu_custom_call.1} parent=27 // pred_region
          %s272 = ssub.s32 128, 128
          %273 = vsyncadd %s264, %s272
          %s274 = smul.addr %s16, 2
          %s275 = smul.addr %s274, 64
          %s276 = scalar_lea.hbm %s2, %s275
          %s278 = sshll.u32 %s267, 4
          %s279 = int_to_ptr.vmem [resolvable:$true] %s278
          %281 = dma.vmem_to_hbm [thread:$0]  %s279, 128, %s276, %s264
        $region32: #{tpu_custom_call.1} parent=27 // pred_fallthru
          _
      $region28: #{tpu_custom_call.1} parent=5 // pred_fallthru
        _
      %p282 = scmp.le.s32.totalorder 2, %s11
      // Predicated region
      $region33: #{tpu_custom_call.1} parent=5 // pred_check
        %p283 = pneg %p282
      $region34: #{tpu_custom_call.1} parent=5 // pred_check_branch
        %285 = sbr.rel (%p283) target = $region36
      $region35: #{tpu_custom_call.1} parent=5 // pred_region
        %s286 = ssub.s32 %s11, 2
        // Predicated region
        $region37: #{tpu_custom_call.1} parent=35 // pred_check
          %p287 = pneg %p87
        $region38: #{tpu_custom_call.1} parent=35 // pred_check_branch
          %289 = sbr.rel (%p287) target = $region40
        $region39: #{tpu_custom_call.1} parent=35 // pred_region
          %s290 = sand.u32 %s72, 1
          %s291 = scalar_lea.sflag [#allocation3], %s290
          %s292 = sand.u32 %s72, 1
          %s293 = smul.addr %s292, 8
          %s294 = scalar_lea.vmem [#allocation2], %s293
          %295 = dma.done %s291, 128
        $region40: #{tpu_custom_call.1} parent=35 // pred_fallthru
          _
      $region36: #{tpu_custom_call.1} parent=5 // pred_fallthru
        _
    $region6: #{tpu_custom_call.1} parent=1 // loop_footer
      %s15 = sadd.s32 1, %s11
    $region7: #{tpu_custom_call.1} parent=1 // loop_footer_branch
      %10 = sbr.rel target = $region3
    $region8: #{tpu_custom_call.1} parent=1 // loop_exit
      _
    %296 = vsyncpa [#allocation3], 1
    %s297 = scalar_lea.sflag [#allocation3], 1
    %298 = vsyncpa %s297, 1

</llo_original>
